<compile_context>
chip_gen: v5e
topology: v5e:2x2
jax: 0.10.0
libtpu: 0.0.40
codegen_flags: <defaults>
</compile_context>

<pallas_src>
import jax
import jax.numpy as jnp
import numpy as np
from jax import lax
from jax.experimental import pallas as pl
from jax.experimental.pallas import tpu as pltpu


def m2_kernel(u_ref, w_in_t_ref, w_short_t_ref, b_short_ref, k_t_ref,
              w_out_t_ref, b_out_ref, out_ref, xpad3_ref, x1v_pad_ref):
    T, D = out_ref.shape                    # rows per block (= seqs_per_block * L), d_model
    L = k_t_ref.shape[0]                    # sequence length == long-filter length
    C3 = w_in_t_ref.shape[1]                # 3 * d_model
    PAD3 = (xpad3_ref.shape[0] - T) // 2    # pad rows (top & bottom) for the short conv
    PADL = x1v_pad_ref.shape[0] - T         # pad rows (top) for the long causal conv

    # Local position of each row inside its length-L sequence (batch folded on rows).
    lpos = lax.broadcasted_iota(jnp.int32, (T, 1), 0) % L

    # ---- 1. input projection: x = u @ W_in^T  (MXU, no bias) -------------------
    x = jnp.dot(u_ref[...], w_in_t_ref[...],
                preferred_element_type=jnp.float32)                 # (T, 3D)

    # ---- 2. depthwise short conv, kernel=3, padding=1 (pure VPU FMAs) ----------
    zeros_pad3 = jnp.zeros((PAD3, C3), jnp.float32)
    xpad3_ref[0:PAD3, :] = zeros_pad3
    xpad3_ref[PAD3 + T:PAD3 + T + PAD3, :] = zeros_pad3
    xpad3_ref[PAD3:PAD3 + T, :] = x

    x_m1 = jnp.where(lpos >= 1, xpad3_ref[pl.ds(PAD3 - 1, T), :], 0.0)      # x[t-1]
    x_p1 = jnp.where(lpos <= L - 2, xpad3_ref[pl.ds(PAD3 + 1, T), :], 0.0)  # x[t+1]
    w_s = w_short_t_ref[...]                                        # (3, 3D)
    xs = (w_s[0:1, :] * x_m1 + w_s[1:2, :] * x + w_s[2:3, :] * x_p1
          + b_short_ref[...])                                       # (T, 3D)

    # ---- 3. split (channel thirds live on lanes) + gate ------------------------
    x1 = xs[:, 0:D]
    x2 = xs[:, D:2 * D]
    v = xs[:, 2 * D:3 * D]
    x1v = x1 * v                                                    # (T, D)

    # ---- 4. per-channel causal long conv: shifted reads + VPU FMA accumulate ---
    #   y[t, c] = sum_{s=0}^{L-1} [lpos_t >= s] * x1v[t - s, c] * k[c, s]
    x1v_pad_ref[0:PADL, :] = jnp.zeros((PADL, D), jnp.float32)
    x1v_pad_ref[PADL:PADL + T, :] = x1v

    def tap(s, y):
        shifted = x1v_pad_ref[pl.ds(PADL - s, T), :]                # x1v[t - s]  (T, D)
        k_s = k_t_ref[pl.ds(s, 1), :]                               # tap s, all channels (1, D)
        return y + jnp.where(lpos >= s, shifted, 0.0) * k_s

    y = lax.fori_loop(0, L, tap, jnp.zeros((T, D), jnp.float32))

    # ---- 5. gate + output projection: out = y @ W_out^T + b  (MXU) -------------
    y = y * x2
    out = jnp.dot(y, w_out_t_ref[...],
                  preferred_element_type=jnp.float32) + b_out_ref[...]
    out_ref[...] = out.astype(out_ref.dtype)


def _choose_seqs_per_block(B, L, max_rows=512):
    """Whole sequences per grid step; block rows must be a multiple of 8 or = B*L."""
    bb = max(1, min(B, max_rows // max(L, 1)))
    while B % bb != 0:          # tile the batch evenly
        bb -= 1
    if (bb * L) % 8 != 0 and bb != B:
        bb = B                  # fall back to a single full block
    return bb


def monarch_mixer_forward(u, params):
    """u: (B, L, D) float32. Returns ((B, L, D), None) like the torch module."""
    B, L, D = u.shape
    u2 = u.reshape(B * L, D)                       # free: no activation transpose

    # One-time weight re-orientation (tiny, done outside the kernel).
    w_in_t = jnp.transpose(params["w_in"])         # (D, 3D)   so kernel does u @ W_in^T
    w_short_t = jnp.transpose(params["w_short"])   # (3, 3D)
    b_short = params["b_short"].reshape(1, 3 * D)  # (1, 3D)
    k_t = jnp.transpose(params["k"])               # (L, D)    tap-major filter
    w_out_t = jnp.transpose(params["w_out"])       # (D, D)    so kernel does y @ W_out^T
    b_out = params["b_out"].reshape(1, D)          # (1, D)

    bb = _choose_seqs_per_block(B, L)
    T_BLK = bb * L
    num_blocks = B // bb
    PAD3 = 8
    PADL = max(8, ((L + 7) // 8) * 8)

    out2 = pl.pallas_call(
        m2_kernel,
        out_shape=jax.ShapeDtypeStruct((B * L, D), jnp.float32),
        grid_spec=pltpu.PrefetchScalarGridSpec(
            num_scalar_prefetch=0,
            grid=(num_blocks,),
            in_specs=[
                pl.BlockSpec((T_BLK, D), lambda i: (i, 0)),     # u rows (batch*seq)
                pl.BlockSpec((D, 3 * D), lambda i: (0, 0)),     # W_in^T
                pl.BlockSpec((3, 3 * D), lambda i: (0, 0)),     # short-conv weights^T
                pl.BlockSpec((1, 3 * D), lambda i: (0, 0)),     # short-conv bias
                pl.BlockSpec((L, D), lambda i: (0, 0)),         # long filter^T
                pl.BlockSpec((D, D), lambda i: (0, 0)),         # W_out^T
                pl.BlockSpec((1, D), lambda i: (0, 0)),         # out bias
            ],
            out_specs=pl.BlockSpec((T_BLK, D), lambda i: (i, 0)),
            scratch_shapes=[
                pltpu.VMEM((T_BLK + 2 * PAD3, 3 * D), jnp.float32),  # short-conv pad buf
                pltpu.VMEM((PADL + T_BLK, D), jnp.float32),          # long-conv pad buf
            ],
        ),
        compiler_params=pltpu.CompilerParams(
            dimension_semantics=("parallel",)),
    )(u2, w_in_t, w_short_t, b_short, k_t, w_out_t, b_out)

    return out2.reshape(B, L, D), None


def reference_forward(u, params):
    """Pure-JAX reference of the torch forward (for correctness check)."""
    B, L, D = u.shape
    u_t = jnp.transpose(u, (0, 2, 1))                                  # (B, D, L)
    x = jnp.einsum("oh,bhl->bol", params["w_in"], u_t)                 # (B, 3D, L)
    xp = jnp.pad(x, ((0, 0), (0, 0), (1, 1)))
    w = params["w_short"]
    xs = (w[None, :, 0:1] * xp[:, :, 0:L]
          + w[None, :, 1:2] * xp[:, :, 1:L + 1]
          + w[None, :, 2:3] * xp[:, :, 2:L + 2]
          + params["b_short"][None, :, None])
    x1, x2, v = xs[:, :D], xs[:, D:2 * D], xs[:, 2 * D:]
    x1v = x1 * v
    k = params["k"]                                                    # (D, L)
    idx = jnp.arange(L)[None, :] - jnp.arange(L)[:, None]              # (t, l) -> l - t
    T = jnp.where((idx >= 0)[None], k[:, jnp.clip(idx, 0, L - 1)], 0.0)  # (D, L, L)
    y = jnp.einsum("bht,htl->bhl", x1v, T)
    y = y * x2
    y_t = jnp.transpose(y, (0, 2, 1))                                  # (B, L, D)
    out = jnp.einsum("blh,oh->blo", y_t, params["w_out"]) + params["b_out"][None, None, :]
    return out


if __name__ == "__main__":
    # Small shapes consistent with the module: B=2, L=l_max=16, d_model=32.
    B, L, D = 2, 16, 32
    key = jax.random.PRNGKey(0)
    ks = jax.random.split(key, 7)

    u = jax.random.normal(ks[0], (B, L, D), jnp.float32)
    params = {
        # in_linear: nn.Linear(D, 3D); forward uses only .weight (no bias applied).
        "w_in": jax.random.normal(ks[1], (3 * D, D), jnp.float32) / jnp.sqrt(D),
        # depthwise short filter: Conv1d(3D, 3D, 3, groups=3D) weights (3D,1,3)->(3D,3) + bias
        "w_short": jax.random.normal(ks[2], (3 * D, 3), jnp.float32) * 0.5,
        "b_short": jax.random.normal(ks[3], (3 * D,), jnp.float32) * 0.1,
        # inference-mode long-conv filter: nn.Parameter(randn(d_model, l_max))
        # (filter_bias exists in the module but is unused in forward -> omitted)
        "k": jax.random.normal(ks[4], (D, L), jnp.float32) / jnp.sqrt(L),
        # out_linear: nn.Linear(D, D)
        "w_out": jax.random.normal(ks[5], (D, D), jnp.float32) / jnp.sqrt(D),
        "b_out": jax.random.normal(ks[6], (D,), jnp.float32) * 0.1,
    }

    out, extra = monarch_mixer_forward(u, params)
    out = jax.block_until_ready(out)
    assert out.shape == (B, L, D) and extra is None

    ref = reference_forward(u, params)
    np.testing.assert_allclose(np.asarray(out), np.asarray(ref), atol=2e-3, rtol=2e-3)
    print("KERNEL_OK")
</pallas_src>

<mosaic_0001>
module attributes {stable_mosaic.version = 11 : i64} {
  func.func @m2_kernel(%arg0: i32, %arg1: memref<32x32xf32, #tpu.memory_space<vmem>>, %arg2: memref<32x96xf32, #tpu.memory_space<vmem>>, %arg3: memref<3x96xf32, #tpu.memory_space<vmem>>, %arg4: memref<1x96xf32, #tpu.memory_space<vmem>>, %arg5: memref<16x32xf32, #tpu.memory_space<vmem>>, %arg6: memref<32x32xf32, #tpu.memory_space<vmem>>, %arg7: memref<1x32xf32, #tpu.memory_space<vmem>>, %arg8: memref<32x32xf32, #tpu.memory_space<vmem>>, %arg9: memref<48x96xf32, #tpu.memory_space<vmem>>, %arg10: memref<48x32xf32, #tpu.memory_space<vmem>>) attributes {dimension_semantics = [#tpu.dimension_semantics<parallel>], iteration_bounds = array<i64: 1>, scalar_prefetch = 0 : i64, scratch_operands = 2 : i64, tpu.core_type = #tpu.core_type<tc>, window_params = [{transform_indices = @transform_0, window_bounds = array<i64: 32, 32>}, {pipeline_mode = #tpu.pipeline_mode<synchronous>, transform_indices = @transform_1, window_bounds = array<i64: 32, 96>}, {pipeline_mode = #tpu.pipeline_mode<synchronous>, transform_indices = @transform_2, window_bounds = array<i64: 3, 96>}, {pipeline_mode = #tpu.pipeline_mode<synchronous>, transform_indices = @transform_3, window_bounds = array<i64: 1, 96>}, {pipeline_mode = #tpu.pipeline_mode<synchronous>, transform_indices = @transform_4, window_bounds = array<i64: 16, 32>}, {pipeline_mode = #tpu.pipeline_mode<synchronous>, transform_indices = @transform_5, window_bounds = array<i64: 32, 32>}, {pipeline_mode = #tpu.pipeline_mode<synchronous>, transform_indices = @transform_6, window_bounds = array<i64: 1, 32>}, {transform_indices = @transform_7, window_bounds = array<i64: 32, 32>}]} {
    %0 = tpu.iota {dimensions = array<i32: 0>} : vector<32x1xi32>
    %c16_i32 = arith.constant 16 : i32
    %c0_i32 = arith.constant 0 : i32
    %1 = arith.cmpi eq, %c16_i32, %c0_i32 : i32
    %c1_i32 = arith.constant 1 : i32
    %2 = arith.select %1, %c1_i32, %c16_i32 : i32
    %3 = vector.broadcast %2 : i32 to vector<32x1xi32>
    %4 = arith.remsi %0, %3 : vector<32x1xi32>
    %c0_i32_0 = arith.constant 0 : i32
    %5 = vector.broadcast %c0_i32_0 : i32 to vector<32x1xi32>
    %6 = arith.cmpi ne, %4, %5 : vector<32x1xi32>
    %c0_i32_1 = arith.constant 0 : i32
    %7 = vector.broadcast %c0_i32_1 : i32 to vector<32x1xi32>
    %8 = arith.cmpi slt, %4, %7 : vector<32x1xi32>
    %c0_i32_2 = arith.constant 0 : i32
    %9 = arith.cmpi slt, %2, %c0_i32_2 : i32
    %10 = vector.broadcast %9 : i1 to vector<32x1xi1>
    %11 = vector.broadcast %10 : vector<32x1xi1> to vector<32x1xi1>
    %12 = arith.xori %8, %11 : vector<32x1xi1>
    %13 = arith.andi %12, %6 : vector<32x1xi1>
    %14 = vector.broadcast %2 : i32 to vector<32x1xi32>
    %15 = arith.addi %4, %14 : vector<32x1xi32>
    %16 = arith.select %13, %15, %4 : vector<32x1xi1>, vector<32x1xi32>
    %c0 = arith.constant 0 : index
    %c0_3 = arith.constant 0 : index
    %17 = vector.load %arg1[%c0, %c0_3] : memref<32x32xf32, #tpu.memory_space<vmem>>, vector<32x32xf32>
    %c0_4 = arith.constant 0 : index
    %c0_5 = arith.constant 0 : index
    %18 = vector.load %arg2[%c0_4, %c0_5] : memref<32x96xf32, #tpu.memory_space<vmem>>, vector<32x96xf32>
    %cst = arith.constant dense<0.000000e+00> : vector<32x96xf32>
    %19 = tpu.matmul %17, %18, %cst {dimension_numbers = #tpu.dot_dimension_numbers<[1], [0], [0], [1], [0, 0, 1, 1], [], []>} : vector<32x32xf32>, vector<32x96xf32>, vector<32x96xf32> -> vector<32x96xf32>
    %cst_6 = arith.constant 0.000000e+00 : f32
    %20 = vector.broadcast %cst_6 : f32 to vector<8x96xf32>
    %c0_7 = arith.constant 0 : index
    %c0_8 = arith.constant 0 : index
    %21 = vector.load %arg9[%c0_7, %c0_8] : memref<48x96xf32, #tpu.memory_space<vmem>>, vector<8x96xf32>
    tpu.vector_store %arg9[%c0_7, %c0_8], %20 {strides = array<i32>} : memref<48x96xf32, #tpu.memory_space<vmem>>, vector<8x96xf32>,
    %c40 = arith.constant 40 : index
    %c0_9 = arith.constant 0 : index
    %22 = vector.load %arg9[%c40, %c0_9] : memref<48x96xf32, #tpu.memory_space<vmem>>, vector<8x96xf32>
    tpu.vector_store %arg9[%c40, %c0_9], %20 {strides = array<i32>} : memref<48x96xf32, #tpu.memory_space<vmem>>, vector<8x96xf32>,
    %c8 = arith.constant 8 : index
    %c0_10 = arith.constant 0 : index
    %23 = vector.load %arg9[%c8, %c0_10] : memref<48x96xf32, #tpu.memory_space<vmem>>, vector<32x96xf32>
    tpu.vector_store %arg9[%c8, %c0_10], %19 {strides = array<i32>} : memref<48x96xf32, #tpu.memory_space<vmem>>, vector<32x96xf32>,
    %c1_i32_11 = arith.constant 1 : i32
    %24 = vector.broadcast %c1_i32_11 : i32 to vector<32x1xi32>
    %25 = arith.cmpi sge, %16, %24 : vector<32x1xi32>
    %c7 = arith.constant 7 : index
    %c0_12 = arith.constant 0 : index
    %26 = vector.load %arg9[%c7, %c0_12] : memref<48x96xf32, #tpu.memory_space<vmem>>, vector<32x96xf32>
    %cst_13 = arith.constant 0.000000e+00 : f32
    %27 = vector.shape_cast %25 : vector<32x1xi1> to vector<32x1xi1>
    %28 = vector.broadcast %27 : vector<32x1xi1> to vector<32x96xi1>
    %29 = vector.broadcast %cst_13 : f32 to vector<32x96xf32>
    %30 = arith.select %28, %26, %29 : vector<32x96xi1>, vector<32x96xf32>
    %c14_i32 = arith.constant 14 : i32
    %31 = vector.broadcast %c14_i32 : i32 to vector<32x1xi32>
    %32 = arith.cmpi sle, %16, %31 : vector<32x1xi32>
    %c9 = arith.constant 9 : index
    %c0_14 = arith.constant 0 : index
    %33 = vector.load %arg9[%c9, %c0_14] : memref<48x96xf32, #tpu.memory_space<vmem>>, vector<32x96xf32>
    %cst_15 = arith.constant 0.000000e+00 : f32
    %34 = vector.shape_cast %32 : vector<32x1xi1> to vector<32x1xi1>
    %35 = vector.broadcast %34 : vector<32x1xi1> to vector<32x96xi1>
    %36 = vector.broadcast %cst_15 : f32 to vector<32x96xf32>
    %37 = arith.select %35, %33, %36 : vector<32x96xi1>, vector<32x96xf32>
    %c0_16 = arith.constant 0 : index
    %c0_17 = arith.constant 0 : index
    %38 = vector.load %arg3[%c0_16, %c0_17] : memref<3x96xf32, #tpu.memory_space<vmem>>, vector<3x96xf32>
    %39 = vector.extract_strided_slice %38 {offsets = [0, 0], sizes = [1, 96], strides = [1, 1]} : vector<3x96xf32> to vector<1x96xf32>
    %40 = vector.broadcast %39 : vector<1x96xf32> to vector<32x96xf32>
    %41 = arith.mulf %40, %30 : vector<32x96xf32>
    %42 = vector.extract_strided_slice %38 {offsets = [1, 0], sizes = [1, 96], strides = [1, 1]} : vector<3x96xf32> to vector<1x96xf32>
    %43 = vector.broadcast %42 : vector<1x96xf32> to vector<32x96xf32>
    %44 = arith.mulf %43, %19 : vector<32x96xf32>
    %45 = arith.addf %41, %44 : vector<32x96xf32>
    %46 = vector.extract_strided_slice %38 {offsets = [2, 0], sizes = [1, 96], strides = [1, 1]} : vector<3x96xf32> to vector<1x96xf32>
    %47 = vector.broadcast %46 : vector<1x96xf32> to vector<32x96xf32>
    %48 = arith.mulf %47, %37 : vector<32x96xf32>
    %49 = arith.addf %45, %48 : vector<32x96xf32>
    %c0_18 = arith.constant 0 : index
    %c0_19 = arith.constant 0 : index
    %50 = vector.load %arg4[%c0_18, %c0_19] : memref<1x96xf32, #tpu.memory_space<vmem>>, vector<1x96xf32>
    %51 = vector.broadcast %50 : vector<1x96xf32> to vector<32x96xf32>
    %52 = arith.addf %49, %51 : vector<32x96xf32>
    %53 = vector.extract_strided_slice %52 {offsets = [0, 0], sizes = [32, 32], strides = [1, 1]} : vector<32x96xf32> to vector<32x32xf32>
    %54 = vector.extract_strided_slice %52 {offsets = [0, 32], sizes = [32, 32], strides = [1, 1]} : vector<32x96xf32> to vector<32x32xf32>
    %55 = vector.extract_strided_slice %52 {offsets = [0, 64], sizes = [32, 32], strides = [1, 1]} : vector<32x96xf32> to vector<32x32xf32>
    %56 = arith.mulf %53, %55 : vector<32x32xf32>
    %cst_20 = arith.constant 0.000000e+00 : f32
    %57 = vector.broadcast %cst_20 : f32 to vector<16x32xf32>
    %c0_21 = arith.constant 0 : index
    %c0_22 = arith.constant 0 : index
    %58 = vector.load %arg10[%c0_21, %c0_22] : memref<48x32xf32, #tpu.memory_space<vmem>>, vector<16x32xf32>
    tpu.vector_store %arg10[%c0_21, %c0_22], %57 {strides = array<i32>} : memref<48x32xf32, #tpu.memory_space<vmem>>, vector<16x32xf32>,
    %c16 = arith.constant 16 : index
    %c0_23 = arith.constant 0 : index
    %59 = vector.load %arg10[%c16, %c0_23] : memref<48x32xf32, #tpu.memory_space<vmem>>, vector<32x32xf32>
    tpu.vector_store %arg10[%c16, %c0_23], %56 {strides = array<i32>} : memref<48x32xf32, #tpu.memory_space<vmem>>, vector<32x32xf32>,
    %cst_24 = arith.constant 0.000000e+00 : f32
    %60 = vector.broadcast %cst_24 : f32 to vector<32x32xf32>
    %c0_i32_25 = arith.constant 0 : i32
    %c16_i32_26 = arith.constant 16 : i32
    %61 = arith.addi %c0_i32_25, %c16_i32_26 : i32
    %c1_i32_27 = arith.constant 1 : i32
    %62 = scf.for %arg11 = %c0_i32_25 to %61 step %c1_i32_27 iter_args(%arg12 = %60) -> (vector<32x32xf32>)  : i32 {
      %c16_i32_36 = arith.constant 16 : i32
      %70 = arith.subi %c16_i32_36, %arg11 : i32
      %71 = arith.index_cast %70 : i32 to index
      %c0_37 = arith.constant 0 : index
      %72 = vector.load %arg10[%71, %c0_37] : memref<48x32xf32, #tpu.memory_space<vmem>>, vector<32x32xf32>
      %73 = arith.index_cast %arg11 : i32 to index
      %c0_38 = arith.constant 0 : index
      %74 = vector.load %arg5[%73, %c0_38] : memref<16x32xf32, #tpu.memory_space<vmem>>, vector<1x32xf32>
      %75 = vector.broadcast %arg11 : i32 to vector<32x1xi32>
      %76 = arith.cmpi sge, %16, %75 : vector<32x1xi32>
      %cst_39 = arith.constant 0.000000e+00 : f32
      %77 = vector.shape_cast %76 : vector<32x1xi1> to vector<32x1xi1>
      %78 = vector.broadcast %77 : vector<32x1xi1> to vector<32x32xi1>
      %79 = vector.broadcast %cst_39 : f32 to vector<32x32xf32>
      %80 = arith.select %78, %72, %79 : vector<32x32xi1>, vector<32x32xf32>
      %81 = vector.broadcast %74 : vector<1x32xf32> to vector<32x32xf32>
      %82 = arith.mulf %80, %81 : vector<32x32xf32>
      %83 = arith.addf %arg12, %82 : vector<32x32xf32>
      scf.yield %83 : vector<32x32xf32>
    }
    %c16_i32_28 = arith.constant 16 : i32
    %63 = arith.mulf %62, %54 : vector<32x32xf32>
    %c0_29 = arith.constant 0 : index
    %c0_30 = arith.constant 0 : index
    %64 = vector.load %arg6[%c0_29, %c0_30] : memref<32x32xf32, #tpu.memory_space<vmem>>, vector<32x32xf32>
    %cst_31 = arith.constant dense<0.000000e+00> : vector<32x32xf32>
    %65 = tpu.matmul %63, %64, %cst_31 {dimension_numbers = #tpu.dot_dimension_numbers<[1], [0], [0], [1], [0, 0, 1, 1], [], []>} : vector<32x32xf32>, vector<32x32xf32>, vector<32x32xf32> -> vector<32x32xf32>
    %c0_32 = arith.constant 0 : index
    %c0_33 = arith.constant 0 : index
    %66 = vector.load %arg7[%c0_32, %c0_33] : memref<1x32xf32, #tpu.memory_space<vmem>>, vector<1x32xf32>
    %67 = vector.broadcast %66 : vector<1x32xf32> to vector<32x32xf32>
    %68 = arith.addf %65, %67 : vector<32x32xf32>
    %c0_34 = arith.constant 0 : index
    %c0_35 = arith.constant 0 : index
    %69 = vector.load %arg8[%c0_34, %c0_35] : memref<32x32xf32, #tpu.memory_space<vmem>>, vector<32x32xf32>
    tpu.vector_store %arg8[%c0_34, %c0_35], %68 {strides = array<i32>} : memref<32x32xf32, #tpu.memory_space<vmem>>, vector<32x32xf32>,
    return
  }
  func.func @transform_0(%arg0: i32) -> (i32, i32) {
    %c0_i32 = arith.constant 0 : i32
    %c0_i32_0 = arith.constant 0 : i32
    return %arg0, %c0_i32 : i32, i32
  }
  func.func @transform_1(%arg0: i32) -> (i32, i32) {
    %c0_i32 = arith.constant 0 : i32
    %c0_i32_0 = arith.constant 0 : i32
    %c0_i32_1 = arith.constant 0 : i32
    return %c0_i32, %c0_i32_0 : i32, i32
  }
  func.func @transform_2(%arg0: i32) -> (i32, i32) {
    %c0_i32 = arith.constant 0 : i32
    %c0_i32_0 = arith.constant 0 : i32
    %c0_i32_1 = arith.constant 0 : i32
    return %c0_i32, %c0_i32_0 : i32, i32
  }
  func.func @transform_3(%arg0: i32) -> (i32, i32) {
    %c0_i32 = arith.constant 0 : i32
    %c0_i32_0 = arith.constant 0 : i32
    %c0_i32_1 = arith.constant 0 : i32
    return %c0_i32, %c0_i32_0 : i32, i32
  }
  func.func @transform_4(%arg0: i32) -> (i32, i32) {
    %c0_i32 = arith.constant 0 : i32
    %c0_i32_0 = arith.constant 0 : i32
    %c0_i32_1 = arith.constant 0 : i32
    return %c0_i32, %c0_i32_0 : i32, i32
  }
  func.func @transform_5(%arg0: i32) -> (i32, i32) {
    %c0_i32 = arith.constant 0 : i32
    %c0_i32_0 = arith.constant 0 : i32
    %c0_i32_1 = arith.constant 0 : i32
    return %c0_i32, %c0_i32_0 : i32, i32
  }
  func.func @transform_6(%arg0: i32) -> (i32, i32) {
    %c0_i32 = arith.constant 0 : i32
    %c0_i32_0 = arith.constant 0 : i32
    %c0_i32_1 = arith.constant 0 : i32
    return %c0_i32, %c0_i32_0 : i32, i32
  }
  func.func @transform_7(%arg0: i32) -> (i32, i32) {
    %c0_i32 = arith.constant 0 : i32
    %c0_i32_0 = arith.constant 0 : i32
    return %arg0, %c0_i32 : i32, i32
  }
}

</mosaic_0001>

<llo_original>
// kernel: tpu_custom_call.1
$region0: #{tpu_custom_call.1}
  #allocation0 [shape = 'u32[]', space=smem, size = 0x4, offset = 0x4, fixed_abs, tag = 'smem constant byte address 0x4 - core index']
  #allocation1 [shape = 'u32[72,128]{1,0:T(1,128)}', space=vmem, size = 0x9000, scoped, tag = 'internal scratch']
  #allocation2 [shape = 'f32[48,96]{1,0:T(8,128)}', space=vmem, size = 0x6000, scoped, tag = 'scratch operand']
  #allocation3 [shape = 'f32[48,32]{1,0:T(8,128)}', space=vmem, size = 0x6000, scoped, tag = 'scratch operand']
  %s0 = inlined_call_operand.hbm [shape: f32[32,32], index: 0, kind: input, shape index: {}]
  %s1 = inlined_call_operand.hbm [shape: f32[32,96], index: 1, kind: input, shape index: {}]
  %s2 = inlined_call_operand.hbm [shape: f32[3,96], index: 2, kind: input, shape index: {}]
  %s3 = inlined_call_operand.vmem [shape: f32[1,96], index: 3, kind: input, shape index: {}]
  %s4 = inlined_call_operand.hbm [shape: f32[16,32], index: 4, kind: input, shape index: {}]
  %s5 = inlined_call_operand.hbm [shape: f32[32,32], index: 5, kind: input, shape index: {}]
  %s6 = inlined_call_operand.vmem [shape: f32[1,32], index: 6, kind: input, shape index: {}]
  %s7 = inlined_call_operand.hbm [shape: f32[32,32], index: 7, kind: output, shape index: {}]
  %s8 = sld [smem:[#allocation0]]
  $region65: #{tpu_custom_call.1} parent=0
    _
  %s10 = ssub.s32 1, %s8
  %s11 = scalar_select 0, %s10, %s8
  $region1: #{tpu_custom_call.1} parent=0
    #allocation4 [shape = 'u8[16384]{0}', space=vmem, size = 0x4000, scoped, tag = 'input window, operand 0, single buffered']
    #allocation5 [shape = 's32[1]{0}', space=sflag, size = 0x4, scoped, tag = 'scoped memory for tpu_custom_call.1']
    #allocation6 [shape = 's32[1]{0}', space=sflag, size = 0x4, scoped, tag = 'scoped memory for tpu_custom_call.1']
    #allocation7 [shape = 'u8[16384]{0}', space=vmem, size = 0x4000, scoped, tag = 'input window, operand 1, single buffered']
    #allocation8 [shape = 's32[1]{0}', space=sflag, size = 0x4, scoped, tag = 'scoped memory for tpu_custom_call.1']
    #allocation9 [shape = 'u8[2048]{0}', space=vmem, size = 0x800, scoped, tag = 'input window, operand 2, single buffered']
    #allocation10 [shape = 'u8[8192]{0}', space=vmem, size = 0x2000, scoped, tag = 'input window, operand 4, single buffered']
    #allocation11 [shape = 's32[1]{0}', space=sflag, size = 0x4, scoped, tag = 'scoped memory for tpu_custom_call.1']
    #allocation12 [shape = 'u8[16384]{0}', space=vmem, size = 0x4000, scoped, tag = 'input window, operand 5, single buffered']
    #allocation13 [shape = 'u8[16384]{0}', space=vmem, size = 0x4000, scoped, tag = 'output window, operand 0, single buffered']
    %12 = vsyncpa [#allocation5], 0
    %13 = vsyncpa [#allocation8], 0
    %14 = vsyncpa [#allocation11], 0
    %15 = vsyncpa [#allocation6], 0
    // Predicated region
    $region2: #{tpu_custom_call.1} parent=1 // pred_check
      _
    $region3: #{tpu_custom_call.1} parent=1 // pred_check_branch
      %17 = sbr.rel (0) target = $region5
    $region4: #{tpu_custom_call.1} parent=1 // pred_region
      %19 = vsyncadd [#allocation5], 0
      %s20 = sshll.u32 %s0, 4
      %s21 = int_to_ptr.hbm [resolvable:$true] %s20
      %s22 = sshll.u32 [#allocation4], 4
      %s23 = int_to_ptr.vmem [resolvable:$true] %s22
      %28 = dma.hbm_to_vmem [thread:$0]  %s21, 512, %s23, [#allocation5], 128, 128, 8
    $region5: #{tpu_custom_call.1} parent=1 // pred_fallthru
      _
    // Predicated region
    $region6: #{tpu_custom_call.1} parent=1 // pred_check
      _
    $region7: #{tpu_custom_call.1} parent=1 // pred_check_branch
      %30 = sbr.rel (0) target = $region9
    $region8: #{tpu_custom_call.1} parent=1 // pred_region
      %32 = vsyncadd [#allocation8], 0
      %s33 = sshll.u32 %s1, 4
      %s34 = int_to_ptr.hbm [resolvable:$true] %s33
      %s35 = sshll.u32 [#allocation7], 4
      %s36 = int_to_ptr.vmem [resolvable:$true] %s35
      %41 = dma.hbm_to_vmem [thread:$0]  %s34, 512, %s36, [#allocation8], 128, 128, 8
    $region9: #{tpu_custom_call.1} parent=1 // pred_fallthru
      _
    // Predicated region
    $region10: #{tpu_custom_call.1} parent=1 // pred_check
      _
    $region11: #{tpu_custom_call.1} parent=1 // pred_check_branch
      %43 = sbr.rel (0) target = $region13
    $region12: #{tpu_custom_call.1} parent=1 // pred_region
      %45 = vsyncadd [#allocation8], 0
      %s47 = sshll.u32 %s2, 4
      %s48 = int_to_ptr.hbm [resolvable:$true] %s47
      %s49 = sshll.u32 [#allocation9], 4
      %s50 = int_to_ptr.vmem [resolvable:$true] %s49
      %52 = dma.hbm_to_vmem [thread:$0]  %s48, 64, %s50, [#allocation8]
    $region13: #{tpu_custom_call.1} parent=1 // pred_fallthru
      _
    // Predicated region
    $region14: #{tpu_custom_call.1} parent=1 // pred_check
      _
    $region15: #{tpu_custom_call.1} parent=1 // pred_check_branch
      %54 = sbr.rel (0) target = $region17
    $region16: #{tpu_custom_call.1} parent=1 // pred_region
      _
    $region17: #{tpu_custom_call.1} parent=1 // pred_fallthru
      _
    // Predicated region
    $region18: #{tpu_custom_call.1} parent=1 // pred_check
      _
    $region19: #{tpu_custom_call.1} parent=1 // pred_check_branch
      %56 = sbr.rel (0) target = $region21
    $region20: #{tpu_custom_call.1} parent=1 // pred_region
      %58 = vsyncadd [#allocation11], 0
      %s59 = sshll.u32 %s4, 4
      %s60 = int_to_ptr.hbm [resolvable:$true] %s59
      %s61 = sshll.u32 [#allocation10], 4
      %s62 = int_to_ptr.vmem [resolvable:$true] %s61
      %67 = dma.hbm_to_vmem [thread:$0]  %s60, 256, %s62, [#allocation11], 128, 128, 8
    $region21: #{tpu_custom_call.1} parent=1 // pred_fallthru
      _
    // Predicated region
    $region22: #{tpu_custom_call.1} parent=1 // pred_check
      _
    $region23: #{tpu_custom_call.1} parent=1 // pred_check_branch
      %69 = sbr.rel (0) target = $region25
    $region24: #{tpu_custom_call.1} parent=1 // pred_region
      %71 = vsyncadd [#allocation11], 0
      %s72 = sshll.u32 %s5, 4
      %s73 = int_to_ptr.hbm [resolvable:$true] %s72
      %s74 = sshll.u32 [#allocation12], 4
      %s75 = int_to_ptr.vmem [resolvable:$true] %s74
      %80 = dma.hbm_to_vmem [thread:$0]  %s73, 512, %s75, [#allocation11], 128, 128, 8
    $region25: #{tpu_custom_call.1} parent=1 // pred_fallthru
      _
    // Predicated region
    $region26: #{tpu_custom_call.1} parent=1 // pred_check
      _
    $region27: #{tpu_custom_call.1} parent=1 // pred_check_branch
      %82 = sbr.rel (0) target = $region29
    $region28: #{tpu_custom_call.1} parent=1 // pred_region
      _
    $region29: #{tpu_custom_call.1} parent=1 // pred_fallthru
      _
    // Predicated region
    $region30: #{tpu_custom_call.1} parent=1 // pred_check
      _
    $region31: #{tpu_custom_call.1} parent=1 // pred_check_branch
      %84 = sbr.rel (0) target = $region33
    $region32: #{tpu_custom_call.1} parent=1 // pred_region
      %86 = dma.done [#allocation5], 512
    $region33: #{tpu_custom_call.1} parent=1 // pred_fallthru
      _
    // Predicated region
    $region34: #{tpu_custom_call.1} parent=1 // pred_check
      _
    $region35: #{tpu_custom_call.1} parent=1 // pred_check_branch
      %88 = sbr.rel (0) target = $region37
    $region36: #{tpu_custom_call.1} parent=1 // pred_region
      %90 = dma.done [#allocation8], 512
    $region37: #{tpu_custom_call.1} parent=1 // pred_fallthru
      _
    // Predicated region
    $region38: #{tpu_custom_call.1} parent=1 // pred_check
      _
    $region39: #{tpu_custom_call.1} parent=1 // pred_check_branch
      %92 = sbr.rel (0) target = $region41
    $region40: #{tpu_custom_call.1} parent=1 // pred_region
      %94 = dma.done [#allocation8], 64
    $region41: #{tpu_custom_call.1} parent=1 // pred_fallthru
      _
    // Predicated region
    $region42: #{tpu_custom_call.1} parent=1 // pred_check
      _
    $region43: #{tpu_custom_call.1} parent=1 // pred_check_branch
      %96 = sbr.rel (0) target = $region45
    $region44: #{tpu_custom_call.1} parent=1 // pred_region
      %98 = dma.done [#allocation11], 256
    $region45: #{tpu_custom_call.1} parent=1 // pred_fallthru
      _
    // Predicated region
    $region46: #{tpu_custom_call.1} parent=1 // pred_check
      _
    $region47: #{tpu_custom_call.1} parent=1 // pred_check_branch
      %100 = sbr.rel (0) target = $region49
    $region48: #{tpu_custom_call.1} parent=1 // pred_region
      %102 = dma.done [#allocation11], 512
    $region49: #{tpu_custom_call.1} parent=1 // pred_fallthru
      _
    %v103 = vlaneseq
    %v104 = vshrl.u32 %v103, 7
    %v105 = vadd.s32 %v104, 8
    %v106 = vadd.s32 %v104, 16
    %v107 = vadd.s32 %v104, 24
    %vm108 = vcmp.lt.s32.totalorder %v104, 0
    %v109 = vsub.s32 0, %v104
    %v110 = vsel %vm108, %v109, %v104
    %v111 = vshrl.u32 %v110, 4
    %v112 = vand.u32 %v110, 15
    %v113 = vsub.s32 0, %v112
    %v114 = vsel %vm108, %v113, %v112
    %vm115 = vcmp.lt.s32.totalorder %v105, 0
    %v116 = vsub.s32 0, %v105
    %v117 = vsel %vm115, %v116, %v105
    %v118 = vshrl.u32 %v117, 4
    %v119 = vand.u32 %v117, 15
    %v120 = vsub.s32 0, %v119
    %v121 = vsel %vm115, %v120, %v119
    %vm122 = vcmp.lt.s32.totalorder %v106, 0
    %v123 = vsub.s32 0, %v106
    %v124 = vsel %vm122, %v123, %v106
    %v125 = vshrl.u32 %v124, 4
    %v126 = vand.u32 %v124, 15
    %v127 = vsub.s32 0, %v126
    %v128 = vsel %vm122, %v127, %v126
    %vm129 = vcmp.lt.s32.totalorder %v107, 0
    %v130 = vsub.s32 0, %v107
    %v131 = vsel %vm129, %v130, %v107
    %v132 = vshrl.u32 %v131, 4
    %v133 = vand.u32 %v131, 15
    %v134 = vsub.s32 0, %v133
    %v135 = vsel %vm129, %v134, %v133
    %vm136 = vcmp.ne.s32.totalorder %v114, 0
    %vm137 = vcmp.ne.s32.totalorder %v121, 0
    %vm138 = vcmp.ne.s32.totalorder %v128, 0
    %vm139 = vcmp.ne.s32.totalorder %v135, 0
    %vm140 = vcmp.lt.s32.totalorder %v114, 0
    %vm141 = vcmp.lt.s32.totalorder %v121, 0
    %vm142 = vcmp.lt.s32.totalorder %v128, 0
    %vm143 = vcmp.lt.s32.totalorder %v135, 0
    %vm144 = vmand %vm140, %vm136
    %vm145 = vmand %vm141, %vm137
    %vm146 = vmand %vm142, %vm138
    %vm147 = vmand %vm143, %vm139
    %v148 = vadd.s32 %v114, 16
    %v149 = vadd.s32 %v121, 16
    %v150 = vadd.s32 %v128, 16
    %v151 = vadd.s32 %v135, 16
    %v152 = vsel %vm144, %v148, %v114
    %v153 = vsel %vm145, %v149, %v121
    %v154 = vsel %vm146, %v150, %v128
    %v155 = vsel %vm147, %v151, %v135
    %v156 = vld [vmem:[#allocation4] sm:$0xff]
    %v157 = vld [vmem:[#allocation4 + $0x8] sm:$0xff]
    %v158 = vld [vmem:[#allocation4 + $0x10] sm:$0xff]
    %v159 = vld [vmem:[#allocation4 + $0x18] sm:$0xff]
    %v160 = vld [vmem:[#allocation7] sm:$0xff]
    %v161 = vld [vmem:[#allocation7 + $0x8] sm:$0xff]
    %v162 = vld [vmem:[#allocation7 + $0x10] sm:$0xff]
    %v163 = vld [vmem:[#allocation7 + $0x18] sm:$0xff]
    %vm164 = vcmask 261120
    %v166 = vsel %vm164, %v156, 0
    %v169 = vsel %vm164, %v157, 0
    %v172 = vsel %vm164, %v158, 0
    %v175 = vsel %vm164, %v159, 0
    %177 = vmatpush.msra.mxu0 0.0
    %178 = vmatpush.msra.mxu0 0.0
    %179 = vmatpush.msra.mxu0 0.0
    %180 = vmatpush.msra.mxu0 0.0
    %181 = vmatpush.msra.mxu0 0.0
    %182 = vmatpush.msra.mxu0 0.0
    %183 = vmatpush.msra.mxu0 0.0
    %184 = vmatpush.msra.mxu0 0.0
    %185 = vmatpush.msra.mxu0 0.0
    %186 = vmatpush.msra.mxu0 0.0
    %187 = vmatpush.msra.mxu0 0.0
    %188 = vmatpush.msra.mxu0 0.0
    %189 = vmatpush.msra.mxu0 %v163
    %190 = vmatpush.msra.mxu0 %v162
    %191 = vmatpush.msra.mxu0 %v161
    %192 = vmatpush.msra.mxu0 %v160
    %193 = vmatmul.f32.gmra.mxu0 %v166
    %v194 = vpop.f32.mrf.mxu0
    %v195 = vadd.f32 0.0, %v194
    %196 = vmatmul.f32.gmra.mxu0 %v169
    %v197 = vpop.f32.mrf.mxu0
    %v198 = vadd.f32 0.0, %v197
    %199 = vmatmul.f32.gmra.mxu0 %v172
    %v200 = vpop.f32.mrf.mxu0
    %v201 = vadd.f32 0.0, %v200
    %202 = vmatmul.f32.gmra.mxu0 %v175
    %v203 = vpop.f32.mrf.mxu0
    %v204 = vadd.f32 0.0, %v203
    %205 = vdwg.mxu0
    %vm206 = vcmask 785408
    %207 = vst.msk [vmem:[#allocation2] sm:$0xff] %vm206, 0.0
    %208 = vst.msk [vmem:[#allocation2 + $0x28] sm:$0xff] %vm206, 0.0
    %209 = vst.msk [vmem:[#allocation2 + $0x8] sm:$0xff] %vm206, %v195
    %210 = vst.msk [vmem:[#allocation2 + $0x10] sm:$0xff] %vm206, %v198
    %211 = vst.msk [vmem:[#allocation2 + $0x18] sm:$0xff] %vm206, %v201
    %212 = vst.msk [vmem:[#allocation2 + $0x20] sm:$0xff] %vm206, %v204
    %vm213 = vcmp.ge.s32.totalorder %v152, 1
    %vm214 = vcmp.ge.s32.totalorder %v153, 1
    %vm215 = vcmp.ge.s32.totalorder %v154, 1
    %vm216 = vcmp.ge.s32.totalorder %v155, 1
    %v217 = vld [vmem:[#allocation2 + $0x7] sm:$0xff]
    %v218 = vld [vmem:[#allocation2 + $0xf] sm:$0xff]
    %v219 = vld [vmem:[#allocation2 + $0x17] sm:$0xff]
    %v220 = vld [vmem:[#allocation2 + $0x1f] sm:$0xff]
    %v221 = vsel %vm213, 1, 0
    %v222 = vsel %vm214, 1, 0
    %v223 = vsel %vm215, 1, 0
    %v224 = vsel %vm216, 1, 0
    %vm225 = vcmp.eq.s32.totalorder %v221, 1
    %vm226 = vcmp.eq.s32.totalorder %v222, 1
    %vm227 = vcmp.eq.s32.totalorder %v223, 1
    %vm228 = vcmp.eq.s32.totalorder %v224, 1
    %v229 = vsel %vm225, %v217, 0.0
    %v230 = vsel %vm226, %v218, 0.0
    %v231 = vsel %vm227, %v219, 0.0
    %v232 = vsel %vm228, %v220, 0.0
    %vm233 = vcmp.le.s32.totalorder %v152, 14
    %vm234 = vcmp.le.s32.totalorder %v153, 14
    %vm235 = vcmp.le.s32.totalorder %v154, 14
    %vm236 = vcmp.le.s32.totalorder %v155, 14
    %v237 = vld [vmem:[#allocation2 + $0x9] sm:$0xff]
    %v238 = vld [vmem:[#allocation2 + $0x11] sm:$0xff]
    %v239 = vld [vmem:[#allocation2 + $0x19] sm:$0xff]
    %v240 = vld [vmem:[#allocation2 + $0x21] sm:$0xff]
    %v241 = vsel %vm233, 1, 0
    %v242 = vsel %vm234, 1, 0
    %v243 = vsel %vm235, 1, 0
    %v244 = vsel %vm236, 1, 0
    %vm245 = vcmp.eq.s32.totalorder %v241, 1
    %vm246 = vcmp.eq.s32.totalorder %v242, 1
    %vm247 = vcmp.eq.s32.totalorder %v243, 1
    %vm248 = vcmp.eq.s32.totalorder %v244, 1
    %v249 = vsel %vm245, %v237, 0.0
    %v250 = vsel %vm246, %v238, 0.0
    %v251 = vsel %vm247, %v239, 0.0
    %v252 = vsel %vm248, %v240, 0.0
    %v253 = vld [vmem:[#allocation9] sm:$0x7]
    %v254 = vperm.slane %v253, 0
    %v255 = vmul.f32 %v254, %v229
    %v256 = vmul.f32 %v254, %v230
    %v257 = vmul.f32 %v254, %v231
    %v258 = vmul.f32 %v254, %v232
    %v259 = vperm.slane %v253, 1
    %v260 = vmul.f32 %v259, %v195
    %v261 = vmul.f32 %v259, %v198
    %v262 = vmul.f32 %v259, %v201
    %v263 = vmul.f32 %v259, %v204
    %v264 = vadd.f32 %v255, %v260
    %v265 = vadd.f32 %v256, %v261
    %v266 = vadd.f32 %v257, %v262
    %v267 = vadd.f32 %v258, %v263
    %v268 = vperm.slane %v253, 2
    %v269 = vmul.f32 %v268, %v249
    %v270 = vmul.f32 %v268, %v250
    %v271 = vmul.f32 %v268, %v251
    %v272 = vmul.f32 %v268, %v252
    %v273 = vadd.f32 %v264, %v269
    %v274 = vadd.f32 %v265, %v270
    %v275 = vadd.f32 %v266, %v271
    %v276 = vadd.f32 %v267, %v272
    %v277 = vld [vmem:[%s3] sm:$0x1]
    %v279 = vperm.slane %v277, 0
    %v281 = vadd.f32 %v273, %v279
    %v282 = vadd.f32 %v274, %v279
    %v283 = vadd.f32 %v275, %v279
    %v284 = vadd.f32 %v276, %v279
    %289 = vrot.lane.b32.xlu0 %v281, 64
    %v290 = vpop.permute.xlu0 %289
    %291 = vrot.lane.b32.xlu0 %v282, 64
    %v292 = vpop.permute.xlu0 %291
    %293 = vrot.lane.b32.xlu0 %v283, 64
    %v294 = vpop.permute.xlu0 %293
    %295 = vrot.lane.b32.xlu0 %v284, 64
    %v296 = vpop.permute.xlu0 %295
    %v301 = vmul.f32 %v281, %v290
    %v302 = vmul.f32 %v282, %v292
    %v303 = vmul.f32 %v283, %v294
    %v304 = vmul.f32 %v284, %v296
    %305 = vst.msk [vmem:[#allocation3] sm:$0xff] %vm164, 0.0
    %306 = vst.msk [vmem:[#allocation3 + $0x8] sm:$0xff] %vm164, 0.0
    %307 = vst.msk [vmem:[#allocation3 + $0x10] sm:$0xff] %vm164, %v301
    %308 = vst.msk [vmem:[#allocation3 + $0x18] sm:$0xff] %vm164, %v302
    %309 = vst.msk [vmem:[#allocation3 + $0x20] sm:$0xff] %vm164, %v303
    %310 = vst.msk [vmem:[#allocation3 + $0x28] sm:$0xff] %vm164, %v304
    loop: start=0, step=1, limit=16
    $region50: #{tpu_custom_call.1} parent=1 // loop_pre_header
      _
    $region51: #{tpu_custom_call.1} parent=1 // loop_header
      %s312 = sphi 0, %s316
      %p313 = scmp.ge.s32.totalorder %s312, 16
      %v317 = vphi 0.0, %v351
      %v318 = vphi 0.0, %v352
      %v319 = vphi 0.0, %v353
      %v320 = vphi 0.0, %v354
    $region52: #{tpu_custom_call.1} parent=1 // loop_header_branch
      %315 = sbr.rel (%p313) target = $region56
    $region53: #{tpu_custom_call.1} parent=1 // loop_body
      %s321 = ssub.s32 16, %s312
      %s322 = scalar_lea.vmem [#allocation3], %s321
      %v323 = vld [vmem:[%s322] sm:$0xff]
      %v324 = vld [vmem:[%s322 + $0x8] sm:$0xff]
      %v325 = vld [vmem:[%s322 + $0x10] sm:$0xff]
      %v326 = vld [vmem:[%s322 + $0x18] sm:$0xff]
      %s327 = scalar_lea.vmem [#allocation10], %s312
      %v328 = vld [vmem:[%s327] sm:$0x1]
      %v329 = vstv %s312
      %vm330 = vcmp.ge.s32.totalorder %v152, %v329
      %vm331 = vcmp.ge.s32.totalorder %v153, %v329
      %vm332 = vcmp.ge.s32.totalorder %v154, %v329
      %vm333 = vcmp.ge.s32.totalorder %v155, %v329
      %v334 = vsel %vm330, 1, 0
      %v335 = vsel %vm331, 1, 0
      %v336 = vsel %vm332, 1, 0
      %v337 = vsel %vm333, 1, 0
      %vm338 = vcmp.eq.s32.totalorder %v334, 1
      %vm339 = vcmp.eq.s32.totalorder %v335, 1
      %vm340 = vcmp.eq.s32.totalorder %v336, 1
      %vm341 = vcmp.eq.s32.totalorder %v337, 1
      %v342 = vsel %vm338, %v323, 0.0
      %v343 = vsel %vm339, %v324, 0.0
      %v344 = vsel %vm340, %v325, 0.0
      %v345 = vsel %vm341, %v326, 0.0
      %v346 = vperm.slane %v328, 0
      %v347 = vmul.f32 %v342, %v346
      %v348 = vmul.f32 %v343, %v346
      %v349 = vmul.f32 %v344, %v346
      %v350 = vmul.f32 %v345, %v346
      %v351 = vadd.f32 %v317, %v347
      %v352 = vadd.f32 %v318, %v348
      %v353 = vadd.f32 %v319, %v349
      %v354 = vadd.f32 %v320, %v350
    $region54: #{tpu_custom_call.1} parent=1 // loop_footer
      %s316 = sadd.s32 1, %s312
    $region55: #{tpu_custom_call.1} parent=1 // loop_footer_branch
      %311 = sbr.rel target = $region51
    $region56: #{tpu_custom_call.1} parent=1 // loop_exit
      _
    %355 = vrot.lane.b32.xlu0 %v281, 96
    %v356 = vpop.permute.xlu0 %355
    %357 = vrot.lane.b32.xlu0 %v282, 96
    %v358 = vpop.permute.xlu0 %357
    %359 = vrot.lane.b32.xlu0 %v283, 96
    %v360 = vpop.permute.xlu0 %359
    %361 = vrot.lane.b32.xlu0 %v284, 96
    %v362 = vpop.permute.xlu0 %361
    %v367 = vmul.f32 %v317, %v356
    %v368 = vmul.f32 %v318, %v358
    %v369 = vmul.f32 %v319, %v360
    %v370 = vmul.f32 %v320, %v362
    %v371 = vld [vmem:[#allocation12] sm:$0xff]
    %v372 = vld [vmem:[#allocation12 + $0x8] sm:$0xff]
    %v373 = vld [vmem:[#allocation12 + $0x10] sm:$0xff]
    %v374 = vld [vmem:[#allocation12 + $0x18] sm:$0xff]
    %v375 = vld [vmem:[%s6] sm:$0x1]
    %v377 = vperm.slane %v375, 0
    %v380 = vsel %vm164, %v367, 0
    %v383 = vsel %vm164, %v368, 0
    %v386 = vsel %vm164, %v369, 0
    %v389 = vsel %vm164, %v370, 0
    %391 = vmatpush.msra.mxu0 0.0
    %392 = vmatpush.msra.mxu0 0.0
    %393 = vmatpush.msra.mxu0 0.0
    %394 = vmatpush.msra.mxu0 0.0
    %395 = vmatpush.msra.mxu0 0.0
    %396 = vmatpush.msra.mxu0 0.0
    %397 = vmatpush.msra.mxu0 0.0
    %398 = vmatpush.msra.mxu0 0.0
    %399 = vmatpush.msra.mxu0 0.0
    %400 = vmatpush.msra.mxu0 0.0
    %401 = vmatpush.msra.mxu0 0.0
    %402 = vmatpush.msra.mxu0 0.0
    %403 = vmatpush.msra.mxu0 %v374
    %404 = vmatpush.msra.mxu0 %v373
    %405 = vmatpush.msra.mxu0 %v372
    %406 = vmatpush.msra.mxu0 %v371
    %407 = vmatmul.f32.gmra.mxu0 %v380
    %v408 = vpop.f32.mrf.mxu0
    %v409 = vadd.f32 %v377, %v408
    %410 = vmatmul.f32.gmra.mxu0 %v383
    %v411 = vpop.f32.mrf.mxu0
    %v412 = vadd.f32 %v377, %v411
    %413 = vmatmul.f32.gmra.mxu0 %v386
    %v414 = vpop.f32.mrf.mxu0
    %v415 = vadd.f32 %v377, %v414
    %416 = vmatmul.f32.gmra.mxu0 %v389
    %v417 = vpop.f32.mrf.mxu0
    %v418 = vadd.f32 %v377, %v417
    %419 = vdwg.mxu0
    %420 = vst.msk [vmem:[#allocation13] sm:$0xff] %vm164, %v409
    %421 = vst.msk [vmem:[#allocation13 + $0x8] sm:$0xff] %vm164, %v412
    %422 = vst.msk [vmem:[#allocation13 + $0x10] sm:$0xff] %vm164, %v415
    %423 = vst.msk [vmem:[#allocation13 + $0x18] sm:$0xff] %vm164, %v418
    // Predicated region
    $region57: #{tpu_custom_call.1} parent=1 // pred_check
      _
    $region58: #{tpu_custom_call.1} parent=1 // pred_check_branch
      %425 = sbr.rel (0) target = $region60
    $region59: #{tpu_custom_call.1} parent=1 // pred_region
      %427 = vsyncadd [#allocation6], 0
      %s428 = sshll.u32 [#allocation13], 4
      %s429 = int_to_ptr.vmem [resolvable:$true] %s428
      %s430 = sshll.u32 %s7, 4
      %s431 = int_to_ptr.hbm [resolvable:$true] %s430
      %436 = dma.vmem_to_hbm [thread:$0]  %s429, 512, %s431, [#allocation6], 128, 128, 8
    $region60: #{tpu_custom_call.1} parent=1 // pred_fallthru
      _
    // Predicated region
    $region61: #{tpu_custom_call.1} parent=1 // pred_check
      _
    $region62: #{tpu_custom_call.1} parent=1 // pred_check_branch
      %438 = sbr.rel (0) target = $region64
    $region63: #{tpu_custom_call.1} parent=1 // pred_region
      %440 = dma.done [#allocation6], 512
    $region64: #{tpu_custom_call.1} parent=1 // pred_fallthru
      _
    %441 = vsyncpa [#allocation5], 1
    %442 = vsyncpa [#allocation8], 1
    %443 = vsyncpa [#allocation11], 1
    %444 = vsyncpa [#allocation6], 1

</llo_original>
